<compile_context>
chip_gen: v7x
topology: tpu7x:2x2x1
jax: 0.10.0
libtpu: 0.0.40
codegen_flags: <defaults>
</compile_context>

<pallas_src>
import jax
import jax.numpy as jnp
from jax.experimental import pallas as pl
from jax.experimental.pallas import tpu as pltpu


# --------------------------------------------------------------------------
# helpers
# --------------------------------------------------------------------------
def _round_up(x, m):
    return (x + m - 1) // m * m


def _row_tile(M, cap):
    """Row tile: multiple of 8 sublanes, capped so tiny inputs don't over-pad."""
    return min(cap, _round_up(M, 8))


def _col_tile(N, cap=4096):
    """Column tile: largest divisor of N that is a multiple of 128 and <= cap."""
    if N <= cap or N % 128 != 0:
        return N
    for c in range(cap, 127, -128):
        if N % c == 0:
            return c
    return N


def _apply_act(y, act):
    if act == "relu":
        return jnp.maximum(y, 0.0)
    if act == "tanh":
        return jnp.tanh(y)
    return y


_PAR1 = pltpu.CompilerParams(dimension_semantics=("parallel",))
_PAR2 = pltpu.CompilerParams(dimension_semantics=("parallel", "parallel"))


# --------------------------------------------------------------------------
# Pallas kernels
# --------------------------------------------------------------------------
def _make_linear_kernel(act):
    def kernel(x_ref, w_ref, b_ref, o_ref):
        y = jnp.dot(x_ref[...], w_ref[...], preferred_element_type=jnp.float32)
        o_ref[...] = _apply_act(y + b_ref[...], act)
    return kernel


def pallas_linear(x, w, b=None, act=None, bm=256, bn_cap=4096):
    """y = act(x @ w + b); tiled over rows (and columns when N is wide)."""
    x = jnp.asarray(x, jnp.float32)
    w = jnp.asarray(w, jnp.float32)
    M, K = x.shape
    _, N = w.shape
    bm_ = _row_tile(M, bm)
    Mp = _round_up(M, bm_)
    bn_ = _col_tile(N, bn_cap)
    xp = x if Mp == M else jnp.pad(x, ((0, Mp - M), (0, 0)))
    bvec = (jnp.zeros((1, N), jnp.float32) if b is None
            else jnp.asarray(b, jnp.float32).reshape(1, N))
    out = pl.pallas_call(
        _make_linear_kernel(act),
        grid=(Mp // bm_, N // bn_),
        in_specs=[pl.BlockSpec((bm_, K), lambda i, j: (i, 0)),
                  pl.BlockSpec((K, bn_), lambda i, j: (0, j)),
                  pl.BlockSpec((1, bn_), lambda i, j: (0, j))],
        out_specs=pl.BlockSpec((bm_, bn_), lambda i, j: (i, j)),
        out_shape=jax.ShapeDtypeStruct((Mp, N), jnp.float32),
        compiler_params=_PAR2,
    )(xp, w, bvec)
    return out if Mp == M else out[:M]


def _mlp2_kernel(x_ref, w1_ref, b1_ref, w2_ref, b2_ref, o_ref):
    h = jnp.maximum(
        jnp.dot(x_ref[...], w1_ref[...], preferred_element_type=jnp.float32)
        + b1_ref[...], 0.0)
    o_ref[...] = (jnp.dot(h, w2_ref[...], preferred_element_type=jnp.float32)
                  + b2_ref[...])


def pallas_mlp2(x, w1, b1, w2, b2, bm=512, trim=True):
    """(relu(x @ w1 + b1)) @ w2 + b2 fused in one row-tiled kernel."""
    x = jnp.asarray(x, jnp.float32)
    M, K1 = x.shape
    H = w1.shape[1]
    N = w2.shape[1]
    bm_ = _row_tile(M, bm)
    Mp = _round_up(M, bm_)
    xp = x if Mp == M else jnp.pad(x, ((0, Mp - M), (0, 0)))
    row = lambda i: (i, 0)
    full = lambda i: (0, 0)
    out = pl.pallas_call(
        _mlp2_kernel,
        grid=(Mp // bm_,),
        in_specs=[pl.BlockSpec((bm_, K1), row),
                  pl.BlockSpec((K1, H), full),
                  pl.BlockSpec((1, H), full),
                  pl.BlockSpec((H, N), full),
                  pl.BlockSpec((1, N), full)],
        out_specs=pl.BlockSpec((bm_, N), row),
        out_shape=jax.ShapeDtypeStruct((Mp, N), jnp.float32),
        compiler_params=_PAR1,
    )(xp, jnp.asarray(w1, jnp.float32), jnp.asarray(b1, jnp.float32).reshape(1, H),
      jnp.asarray(w2, jnp.float32), jnp.asarray(b2, jnp.float32).reshape(1, N))
    if trim and Mp != M:
        return out[:M]
    return out


def _edge_message_kernel(w_ref, x_ref, o_ref):
    # w: (bE, d_in, d_out) (NNConv layout, NO transpose), x: (bE, d_in)
    # m[e, o] = sum_i w[e, i, o] * x[e, i]   (reduce over axis=1)
    o_ref[...] = jnp.sum(w_ref[...] * x_ref[...][:, :, None], axis=1)


def pallas_edge_messages(w_e3, x_src, tile):
    """Per-edge NNConv messages; row-tiled over (padded) edges."""
    Ep, d_in, d_out = w_e3.shape
    row3 = lambda i: (i, 0, 0)
    row2 = lambda i: (i, 0)
    return pl.pallas_call(
        _edge_message_kernel,
        grid=(Ep // tile,),
        in_specs=[pl.BlockSpec((tile, d_in, d_out), row3),
                  pl.BlockSpec((tile, d_in), row2)],
        out_specs=pl.BlockSpec((tile, d_out), row2),
        out_shape=jax.ShapeDtypeStruct((Ep, d_out), jnp.float32),
        compiler_params=_PAR1,
    )(w_e3, x_src)


def _make_gnn_step_kernel(d):
    def kernel(h_ref, aggr_ref, rw_ref, rb_ref, wih_ref, bih_ref,
               whh_ref, bhh_ref, o_ref):
        h = h_ref[...]
        # NNConv: aggr + h @ root + bias, then ReLU
        msg = jnp.maximum(
            jnp.dot(h, rw_ref[...], preferred_element_type=jnp.float32)
            + rb_ref[...] + aggr_ref[...], 0.0)
        # GRU cell (gates ordered r, z, n as in PyTorch)
        gi = jnp.dot(msg, wih_ref[...], preferred_element_type=jnp.float32) + bih_ref[...]
        gh = jnp.dot(h, whh_ref[...], preferred_element_type=jnp.float32) + bhh_ref[...]
        r = jax.nn.sigmoid(gi[:, 0:d] + gh[:, 0:d])
        z = jax.nn.sigmoid(gi[:, d:2 * d] + gh[:, d:2 * d])
        n = jnp.tanh(gi[:, 2 * d:3 * d] + r * gh[:, 2 * d:3 * d])
        o_ref[...] = (1.0 - z) * n + z * h
    return kernel


def pallas_gnn_step(h_pad, aggr_pad, p, d, tile):
    """Fused NNConv-root + aggregation add + ReLU + GRU cell; one HBM pass."""
    Np = h_pad.shape[0]
    row = lambda i: (i, 0)
    full = lambda i: (0, 0)
    return pl.pallas_call(
        _make_gnn_step_kernel(d),
        grid=(Np // tile,),
        in_specs=[pl.BlockSpec((tile, d), row),
                  pl.BlockSpec((tile, d), row),
                  pl.BlockSpec((d, d), full),
                  pl.BlockSpec((1, d), full),
                  pl.BlockSpec((d, 3 * d), full),
                  pl.BlockSpec((1, 3 * d), full),
                  pl.BlockSpec((d, 3 * d), full),
                  pl.BlockSpec((1, 3 * d), full)],
        out_specs=pl.BlockSpec((tile, d), row),
        out_shape=jax.ShapeDtypeStruct((Np, d), jnp.float32),
        compiler_params=_PAR1,
    )(h_pad, aggr_pad, p["root_w"], p["root_b"],
      p["gru_w_ih"], p["gru_b_ih"], p["gru_w_hh"], p["gru_b_hh"])


def _make_lstm_step_kernel(d):
    def kernel(q_ref, h_ref, c_ref, wih_ref, bih_ref, whh_ref, bhh_ref,
               h_out, c_out):
        gi = jnp.dot(q_ref[...], wih_ref[...], preferred_element_type=jnp.float32) + bih_ref[...]
        gh = jnp.dot(h_ref[...], whh_ref[...], preferred_element_type=jnp.float32) + bhh_ref[...]
        i = jax.nn.sigmoid(gi[:, 0:d] + gh[:, 0:d])
        f = jax.nn.sigmoid(gi[:, d:2 * d] + gh[:, d:2 * d])
        g = jnp.tanh(gi[:, 2 * d:3 * d] + gh[:, 2 * d:3 * d])
        o = jax.nn.sigmoid(gi[:, 3 * d:4 * d] + gh[:, 3 * d:4 * d])
        c_new = f * c_ref[...] + i * g
        c_out[...] = c_new
        h_out[...] = o * jnp.tanh(c_new)
    return kernel


def pallas_set2set_lstm(q_star, h, c, p, d):
    """Fused Set2Set LSTM step (gi, gh and all gates in one tiny kernel)."""
    G = h.shape[0]
    return pl.pallas_call(
        _make_lstm_step_kernel(d),
        out_shape=(jax.ShapeDtypeStruct((G, d), jnp.float32),
                   jax.ShapeDtypeStruct((G, d), jnp.float32)),
    )(q_star, h, c, p["lstm_w_ih"], p["lstm_b_ih"],
      p["lstm_w_hh"], p["lstm_b_hh"])


def _selfweight_apply_kernel(w_ref, v_ref, sc_ref, sh_ref, o_ref):
    # w: (3B, O, L), v: (3B, L); einsum('gkl,gl->gk') + BN + ReLU fused epilogue
    e = jnp.sum(w_ref[...] * v_ref[...][:, None, :], axis=-1)
    o_ref[...] = jnp.maximum(e * sc_ref[...] + sh_ref[...], 0.0)


def pallas_selfweight_apply(weight, rep, scale, shift):
    G3, O, _ = weight.shape
    return pl.pallas_call(
        _selfweight_apply_kernel,
        out_shape=jax.ShapeDtypeStruct((G3, O), jnp.float32),
    )(weight, rep, scale, shift)


def _interaction_apply_kernel(w_ref, v_ref, sc_ref, sh_ref, o_ref):
    # w: (B, F, Mo), v: (B, F); einsum('ijk,ij->ik') + BN + ReLU fused epilogue
    e = jnp.sum(w_ref[...] * v_ref[...][:, :, None], axis=1)
    o_ref[...] = jnp.maximum(e * sc_ref[...] + sh_ref[...], 0.0)


def pallas_interaction_apply(weight, x, scale, shift):
    B, _, Mo = weight.shape
    return pl.pallas_call(
        _interaction_apply_kernel,
        out_shape=jax.ShapeDtypeStruct((B, Mo), jnp.float32),
    )(weight, x, scale, shift)


# --------------------------------------------------------------------------
# parameter init (deterministic, synthetic)
# --------------------------------------------------------------------------
def _init(key, shape, scale=0.1):
    return scale * jax.random.normal(key, shape, dtype=jnp.float32)


def init_bn(C, eps=1e-5):
    gamma = jnp.ones((C,), jnp.float32)
    beta = jnp.zeros((C,), jnp.float32)
    mean = jnp.zeros((C,), jnp.float32)
    var = jnp.ones((C,), jnp.float32)
    scale = gamma / jnp.sqrt(var + eps)
    shift = beta - mean * scale
    return {"scale": scale, "shift": shift}


def init_gnn_params(key, n_node_feat, n_edge_feat, dim):
    ks = iter(jax.random.split(key, 16))
    return {
        "dim": dim,
        "embed_w": _init(next(ks), (n_node_feat, dim)),
        "embed_b": _init(next(ks), (1, dim)),
        "edge_w1": _init(next(ks), (n_edge_feat, 128)),
        "edge_b1": _init(next(ks), (1, 128)),
        "edge_w2": _init(next(ks), (128, dim * dim), scale=0.05),
        "edge_b2": _init(next(ks), (1, dim * dim), scale=0.05),
        "root_w": _init(next(ks), (dim, dim)),
        "root_b": _init(next(ks), (1, dim)),
        "gru_w_ih": _init(next(ks), (dim, 3 * dim)),
        "gru_b_ih": _init(next(ks), (1, 3 * dim)),
        "gru_w_hh": _init(next(ks), (dim, 3 * dim)),
        "gru_b_hh": _init(next(ks), (1, 3 * dim)),
        "lstm_w_ih": _init(next(ks), (2 * dim, 4 * dim)),
        "lstm_b_ih": _init(next(ks), (1, 4 * dim)),
        "lstm_w_hh": _init(next(ks), (dim, 4 * dim)),
        "lstm_b_hh": _init(next(ks), (1, 4 * dim)),
    }


def init_mofnet_params(key, cfg):
    ks = iter(jax.random.split(key, 16))
    T = cfg["topo_emb_size"]
    nemb, eemb = cfg["node_emb_size"], cfg["edge_emb_size"]
    nself, eself = cfg["node_self_size"], cfg["edge_self_size"]
    mof = cfg["mof_emb_size"]
    first = 3 * nself + 3 * eself
    pred_bn = init_bn(32)
    dense_w = _init(next(ks), (mof, 32))        # Linear(mof, 32, bias=False)
    return {
        "cfg": cfg,
        "topo_embedding": _init(next(ks), (cfg["num_topos"], T), scale=0.5),
        "node_weight": {"w": _init(next(ks), (T, 3 * nemb * nself)),
                        "b": _init(next(ks), (1, 3 * nemb * nself))},
        "edge_weight": {"w": _init(next(ks), (T, 3 * eemb * eself)),
                        "b": _init(next(ks), (1, 3 * eemb * eself))},
        "interaction_weight": {"w": _init(next(ks), (T, first * mof)),
                               "b": _init(next(ks), (1, first * mof))},
        "node_bn": init_bn(3 * nself),
        "edge_bn": init_bn(3 * eself),
        "interaction_bn": init_bn(mof),
        "ngnn": init_gnn_params(next(ks), 2, 5, nemb // 2),
        "egnn": init_gnn_params(next(ks), 2, 5, eemb // 2),
        "pred": {
            # eval-mode BatchNorm folded into the (bias-free) dense layer weights
            "dense_w_folded": dense_w * pred_bn["scale"][None, :],
            "dense_b_folded": pred_bn["shift"].reshape(1, 32),
            "out_w": _init(next(ks), (32, 1)),
            "out_b": _init(next(ks), (1, 1)),
        },
    }


# --------------------------------------------------------------------------
# GNN forward (NNConv + GRU + Set2Set)
# --------------------------------------------------------------------------
def gnn_forward(p, graph, depth=3, set2set_steps=3, node_tile_cap=256,
                edge_tile_cap=512):
    x = graph["x"].astype(jnp.float32)              # (N, 2)
    edge_index = graph["edge_index"]                # (2, E)
    edge_attr = graph["edge_attr"].astype(jnp.float32)   # (E, 5)
    batch = graph["batch"]                          # (N,)
    G = graph["num_graphs"]
    N = x.shape[0]
    E = edge_attr.shape[0]
    d = p["dim"]

    # node feature embedding + ReLU (row-tiled, full tiny feature dims)
    nf = pallas_linear(x, p["embed_w"], p["embed_b"], act="relu",
                       bm=node_tile_cap)                              # (N, d)

    # edge-conditioned NNConv weights: fused Linear->ReLU->Linear over edge tiles
    tile_e = _row_tile(E, edge_tile_cap)
    Ep = _round_up(E, tile_e)
    w_e = pallas_mlp2(edge_attr, p["edge_w1"], p["edge_b1"],
                      p["edge_w2"], p["edge_b2"], bm=tile_e, trim=False)  # (Ep, d*d)
    w_e3 = w_e.reshape(Ep, d, d)      # (E, in, out) view -- no HBM transpose

    src, dst = edge_index[0], edge_index[1]
    # TODO(synk): message aggregation (segment mean) and Set2Set per-graph
    #   softmax are data-dependent scatter/gather and stay in plain JAX glue.
    cnt = jax.ops.segment_sum(jnp.ones((E,), jnp.float32), dst, num_segments=N)
    cnt = jnp.maximum(cnt, 1.0)[:, None]

    tile_n = _row_tile(N, node_tile_cap)
    Np = _round_up(N, tile_n)
    h = jnp.pad(nf, ((0, Np - N), (0, 0)))          # GRU hidden == node features
    cnt_pad = jnp.pad(cnt, ((0, Np - N), (0, 0)), constant_values=1.0)
    epad = ((0, Ep - E), (0, 0))

    for _ in range(depth):
        x_src = jnp.pad(h[src], epad)                        # (Ep, d) gather (glue)
        m = pallas_edge_messages(w_e3, x_src, tile_e)[:E]    # (E, d) per-edge message
        aggr = jax.ops.segment_sum(m, dst, num_segments=Np) / cnt_pad   # mean aggr
        # fused: NNConv root linear + aggr + ReLU + GRU cell (single kernel)
        h = pallas_gnn_step(h, aggr, p, d, tile_n)
    nf = h[:N]

    # Set2Set readout (LSTM step fused; attention softmax in JAX glue)
    q_star = jnp.zeros((G, 2 * d), jnp.float32)
    hl = jnp.zeros((G, d), jnp.float32)
    cl = jnp.zeros((G, d), jnp.float32)
    for _ in range(set2set_steps):
        hl, cl = pallas_set2set_lstm(q_star, hl, cl, p, d)
        q = hl
        e = jnp.sum(nf * q[batch], axis=-1)                  # (N,)
        e_max = jax.ops.segment_max(e, batch, num_segments=G)
        e_max = jnp.where(jnp.isfinite(e_max), e_max, 0.0)
        a = jnp.exp(e - e_max[batch])
        denom = jax.ops.segment_sum(a, batch, num_segments=G) + 1e-16
        a = a / denom[batch]
        r = jax.ops.segment_sum(a[:, None] * nf, batch, num_segments=G)
        q_star = jnp.concatenate([q, r], axis=-1)
    return q_star                                            # (G, 2d)


# --------------------------------------------------------------------------
# mofnet_GNN forward
# --------------------------------------------------------------------------
def self_weight_forward(p, topo_emb, B, out_size, emb_size):
    y = pallas_linear(topo_emb, p["w"], p["b"], act="tanh")
    return y.reshape(B, 3, out_size, emb_size)


def interaction_weight_forward(p, topo_emb, B, in_size, out_size):
    y = pallas_linear(topo_emb, p["w"], p["b"], act="tanh")
    return y.reshape(B, in_size, out_size)


def mofnet_forward(params, topo, node_graphs, edge_graphs):
    cfg = params["cfg"]
    B = topo.shape[0]
    nemb, eemb = cfg["node_emb_size"], cfg["edge_emb_size"]
    nself, eself = cfg["node_self_size"], cfg["edge_self_size"]
    mof = cfg["mof_emb_size"]
    first = 3 * nself + 3 * eself

    topo_emb = params["topo_embedding"][topo]      # (B, T); dropout = identity (eval)

    # dynamic_offset_reorder(offset=B) index for a batch of 3*B graphs
    reorder = jnp.concatenate([jnp.arange(s, 3 * B, B) for s in range(B)])

    # ---- node (SBU) branch ----
    node_rep = gnn_forward(params["ngnn"], node_graphs)          # (3B, nemb)
    node_rep = node_rep[reorder]                                  # (3B, nemb)
    nw = self_weight_forward(params["node_weight"], topo_emb, B, nself, nemb)
    nsc = jnp.tile(params["node_bn"]["scale"].reshape(3, nself), (B, 1))
    nsh = jnp.tile(params["node_bn"]["shift"].reshape(3, nself), (B, 1))
    ne = pallas_selfweight_apply(nw.reshape(B * 3, nself, nemb),
                                 node_rep, nsc, nsh).reshape(B, 3 * nself)

    # ---- edge (linker) branch ----
    edge_rep = gnn_forward(params["egnn"], edge_graphs)          # (3B, eemb)
    edge_rep = edge_rep[reorder]
    ew = self_weight_forward(params["edge_weight"], topo_emb, B, eself, eemb)
    esc = jnp.tile(params["edge_bn"]["scale"].reshape(3, eself), (B, 1))
    esh = jnp.tile(params["edge_bn"]["shift"].reshape(3, eself), (B, 1))
    ee = pallas_selfweight_apply(ew.reshape(B * 3, eself, eemb),
                                 edge_rep, esc, esh).reshape(B, 3 * eself)

    # ---- interaction (einsum + BN + ReLU fused) ----
    x = jnp.concatenate([ne, ee], axis=1)                        # (B, first)
    iw = interaction_weight_forward(params["interaction_weight"], topo_emb, B, first, mof)
    x = pallas_interaction_apply(iw, x,
                                 params["interaction_bn"]["scale"].reshape(1, mof),
                                 params["interaction_bn"]["shift"].reshape(1, mof))

    # ---- prediction NN: dense(+folded BN) -> ReLU -> output, fused 2-layer MLP ----
    pp = params["pred"]
    working_cap = pallas_mlp2(x, pp["dense_w_folded"], pp["dense_b_folded"],
                              pp["out_w"], pp["out_b"])          # (B, 1)
    return working_cap


# --------------------------------------------------------------------------
# synthetic graph batch builder
# --------------------------------------------------------------------------
def make_graph_batch(key, num_graphs, nodes_per_graph, edges_per_graph,
                     n_node_feat=2, n_edge_feat=5):
    k1, k2, k3, k4 = jax.random.split(key, 4)
    N = num_graphs * nodes_per_graph
    E = num_graphs * edges_per_graph
    x = jax.random.normal(k1, (N, n_node_feat), dtype=jnp.float32)
    edge_attr = jax.random.normal(k2, (E, n_edge_feat), dtype=jnp.float32)
    src_l = jax.random.randint(k3, (num_graphs, edges_per_graph), 0, nodes_per_graph)
    dst_l = jax.random.randint(k4, (num_graphs, edges_per_graph), 0, nodes_per_graph)
    offs = (jnp.arange(num_graphs) * nodes_per_graph)[:, None]
    edge_index = jnp.stack([(src_l + offs).reshape(-1),
                            (dst_l + offs).reshape(-1)]).astype(jnp.int32)
    batch = jnp.repeat(jnp.arange(num_graphs, dtype=jnp.int32), nodes_per_graph)
    return {"x": x, "edge_index": edge_index, "edge_attr": edge_attr,
            "batch": batch, "num_graphs": num_graphs}


# --------------------------------------------------------------------------
if __name__ == "__main__":
    cfg = dict(num_topos=64, topo_emb_size=32, node_emb_size=32, edge_emb_size=32,
               node_self_size=32, edge_self_size=32, mof_emb_size=32)
    key = jax.random.PRNGKey(0)
    kp, kng, keg, kt = jax.random.split(key, 4)

    params = init_mofnet_params(kp, cfg)

    B = 2  # batch of MOFs; each MOF contributes 3 node graphs and 3 edge graphs
    node_graphs = make_graph_batch(kng, num_graphs=3 * B, nodes_per_graph=5, edges_per_graph=8)
    edge_graphs = make_graph_batch(keg, num_graphs=3 * B, nodes_per_graph=4, edges_per_graph=6)
    topo = jax.random.randint(kt, (B,), 0, cfg["num_topos"]).astype(jnp.int32)

    out = mofnet_forward(params, topo, node_graphs, edge_graphs)
    out = jax.block_until_ready(out)
    assert out.shape == (B, 1) and out.dtype == jnp.float32
    print("KERNEL_OK")
</pallas_src>

<mosaic_0001>
module attributes {stable_mosaic.version = 11 : i64} {
  func.func @kernel(%arg0: i32, %arg1: i32, %arg2: memref<32x2xf32, #tpu.memory_space<vmem>>, %arg3: memref<2x16xf32, #tpu.memory_space<vmem>>, %arg4: memref<1x16xf32, #tpu.memory_space<vmem>>, %arg5: memref<32x16xf32, #tpu.memory_space<vmem>>) attributes {dimension_semantics = [#tpu.dimension_semantics<parallel>, #tpu.dimension_semantics<parallel>], iteration_bounds = array<i64: 1, 1>, scalar_prefetch = 0 : i64, scratch_operands = 0 : i64, tpu.core_type = #tpu.core_type<tc>, window_params = [{transform_indices = @transform_0, window_bounds = array<i64: 32, 2>}, {transform_indices = @transform_1, window_bounds = array<i64: 2, 16>}, {transform_indices = @transform_2, window_bounds = array<i64: 1, 16>}, {transform_indices = @transform_3, window_bounds = array<i64: 32, 16>}]} {
    %c0 = arith.constant 0 : index
    %c0_0 = arith.constant 0 : index
    %0 = vector.load %arg2[%c0, %c0_0] : memref<32x2xf32, #tpu.memory_space<vmem>>, vector<32x2xf32>
    %c0_1 = arith.constant 0 : index
    %c0_2 = arith.constant 0 : index
    %1 = vector.load %arg3[%c0_1, %c0_2] : memref<2x16xf32, #tpu.memory_space<vmem>>, vector<2x16xf32>
    %cst = arith.constant dense<0.000000e+00> : vector<32x16xf32>
    %2 = tpu.matmul %0, %1, %cst {dimension_numbers = #tpu.dot_dimension_numbers<[1], [0], [0], [1], [0, 0, 1, 1], [], []>} : vector<32x2xf32>, vector<2x16xf32>, vector<32x16xf32> -> vector<32x16xf32>
    %c0_3 = arith.constant 0 : index
    %c0_4 = arith.constant 0 : index
    %3 = vector.load %arg4[%c0_3, %c0_4] : memref<1x16xf32, #tpu.memory_space<vmem>>, vector<1x16xf32>
    %4 = vector.broadcast %3 : vector<1x16xf32> to vector<32x16xf32>
    %5 = arith.addf %2, %4 : vector<32x16xf32>
    %cst_5 = arith.constant 0.000000e+00 : f32
    %6 = vector.broadcast %cst_5 : f32 to vector<32x16xf32>
    %7 = arith.maximumf %5, %6 : vector<32x16xf32>
    %c0_6 = arith.constant 0 : index
    %c0_7 = arith.constant 0 : index
    %8 = vector.load %arg5[%c0_6, %c0_7] : memref<32x16xf32, #tpu.memory_space<vmem>>, vector<32x16xf32>
    tpu.vector_store %arg5[%c0_6, %c0_7], %7 {strides = array<i32>} : memref<32x16xf32, #tpu.memory_space<vmem>>, vector<32x16xf32>,
    return
  }
  func.func @transform_0(%arg0: i32, %arg1: i32) -> (i32, i32) {
    %c0_i32 = arith.constant 0 : i32
    %c0_i32_0 = arith.constant 0 : i32
    return %arg0, %c0_i32 : i32, i32
  }
  func.func @transform_1(%arg0: i32, %arg1: i32) -> (i32, i32) {
    %c0_i32 = arith.constant 0 : i32
    %c0_i32_0 = arith.constant 0 : i32
    return %c0_i32, %arg1 : i32, i32
  }
  func.func @transform_2(%arg0: i32, %arg1: i32) -> (i32, i32) {
    %c0_i32 = arith.constant 0 : i32
    %c0_i32_0 = arith.constant 0 : i32
    return %c0_i32, %arg1 : i32, i32
  }
  func.func @transform_3(%arg0: i32, %arg1: i32) -> (i32, i32) {
    %c0_i32 = arith.constant 0 : i32
    return %arg0, %arg1 : i32, i32
  }
}

</mosaic_0001>

<llo_original>
// kernel: tpu_custom_call.1
$region0: #{tpu_custom_call.1}
  #allocation0 [shape = 'u32[]', space=smem, size = 0x4, offset = 0x4, fixed_abs, tag = 'smem constant byte address 0x4 - core index']
  #allocation1 [shape = 'u32[144,128]{1,0:T(1,128)}', space=vmem, size = 0x12000, scoped, tag = 'internal scratch']
  %s0 = inlined_call_operand.vmem [shape: f32[32,2], index: 0, kind: input, shape index: {}]
  %s1 = inlined_call_operand.vmem [shape: f32[2,16], index: 1, kind: input, shape index: {}]
  %s2 = inlined_call_operand.vmem [shape: f32[1,16], index: 2, kind: input, shape index: {}]
  %s3 = inlined_call_operand.vmem [shape: f32[32,16], index: 3, kind: output, shape index: {}]
  %s4 = sld [smem:[#allocation0]]
  $region22: #{tpu_custom_call.1} parent=0
    _
  %s6 = ssub.s32 1, %s4
  %s7 = scalar_select 0, %s6, %s4
  // Predicated region
  $region2: #{tpu_custom_call.1} parent=0 // pred_check
    _
  $region3: #{tpu_custom_call.1} parent=0 // pred_check_branch
    %9 = sbr.rel (0) target = $region5
  $region4: #{tpu_custom_call.1} parent=0 // pred_region
    _
  $region5: #{tpu_custom_call.1} parent=0 // pred_fallthru
    _
  // Predicated region
  $region6: #{tpu_custom_call.1} parent=0 // pred_check
    _
  $region7: #{tpu_custom_call.1} parent=0 // pred_check_branch
    %11 = sbr.rel (0) target = $region9
  $region8: #{tpu_custom_call.1} parent=0 // pred_region
    _
  $region9: #{tpu_custom_call.1} parent=0 // pred_fallthru
    _
  // Predicated region
  $region10: #{tpu_custom_call.1} parent=0 // pred_check
    _
  $region11: #{tpu_custom_call.1} parent=0 // pred_check_branch
    %13 = sbr.rel (0) target = $region13
  $region12: #{tpu_custom_call.1} parent=0 // pred_region
    _
  $region13: #{tpu_custom_call.1} parent=0 // pred_fallthru
    _
  %v14 = vld [vmem:[%s0] sm:$0xff]
  %v15 = vld [vmem:[%s0 + $0x8] sm:$0xff]
  %v16 = vld [vmem:[%s0 + $0x10] sm:$0xff]
  %v17 = vld [vmem:[%s0 + $0x18] sm:$0xff]
  %v18 = vld [vmem:[%s1] sm:$0x3]
  %v19 = vld [vmem:[%s2] sm:$0x1]
  %v21 = vlaneseq
  %v22 = vshrl.u32 %v21, 7
  %v23 = vsub.s32 0, %v22
  %v24 = vrot.slane %v19, %v23
  %vm26 = vcmask 15360
  %v28 = vsel %vm26, %v14, 0
  %v31 = vsel %vm26, %v15, 0
  %v34 = vsel %vm26, %v16, 0
  %v37 = vsel %vm26, %v17, 0
  %vm39 = vcmask 1041408
  %v41 = vsel %vm39, %v18, 0
  %43 = vmatprep.subr.mxu0 0.0
  %44 = vmatpush1.msra.mxu0 %v41
  %45 = vmatprep.subr.mxu0 0.0
  %46 = vmatpush1.msra.mxu0 0.0
  %47 = vmatprep.subr.mxu0 0.0
  %48 = vmatpush1.msra.mxu0 0.0
  %49 = vmatprep.subr.mxu0 0.0
  %50 = vmatpush1.msra.mxu0 0.0
  %51 = vmatprep.subr.mxu0 0.0
  %52 = vmatpush1.msra.mxu0 0.0
  %53 = vmatprep.subr.mxu0 0.0
  %54 = vmatpush1.msra.mxu0 0.0
  %55 = vmatprep.subr.mxu0 0.0
  %56 = vmatpush1.msra.mxu0 0.0
  %57 = vmatprep.subr.mxu0 0.0
  %58 = vmatpush1.msra.mxu0 0.0
  %59 = vmatprep.subr.mxu0 0.0
  %60 = vmatpush1.msra.mxu0 0.0
  %61 = vmatprep.subr.mxu0 0.0
  %62 = vmatpush1.msra.mxu0 0.0
  %63 = vmatprep.subr.mxu0 0.0
  %64 = vmatpush1.msra.mxu0 0.0
  %65 = vmatprep.subr.mxu0 0.0
  %66 = vmatpush1.msra.mxu0 0.0
  %67 = vmatprep.subr.mxu0 0.0
  %68 = vmatpush1.msra.mxu0 0.0
  %69 = vmatprep.subr.mxu0 0.0
  %70 = vmatpush1.msra.mxu0 0.0
  %71 = vmatprep.subr.mxu0 0.0
  %72 = vmatpush1.msra.mxu0 0.0
  %73 = vmatprep.subr.mxu0 0.0
  %74 = vmatpush1.msra.mxu0 0.0
  %75 = vmatprep.subr.mxu0 0.0
  %76 = vmatpush1.msra.mxu0 0.0
  %77 = vmatprep.subr.mxu0 0.0
  %78 = vmatpush1.msra.mxu0 0.0
  %79 = vmatprep.subr.mxu0 0.0
  %80 = vmatpush1.msra.mxu0 0.0
  %81 = vmatprep.subr.mxu0 0.0
  %82 = vmatpush1.msra.mxu0 0.0
  %83 = vmatprep.subr.mxu0 0.0
  %84 = vmatpush1.msra.mxu0 0.0
  %85 = vmatprep.subr.mxu0 0.0
  %86 = vmatpush1.msra.mxu0 0.0
  %87 = vmatprep.subr.mxu0 0.0
  %88 = vmatpush1.msra.mxu0 0.0
  %89 = vmatprep.subr.mxu0 0.0
  %90 = vmatpush1.msra.mxu0 0.0
  %91 = vmatprep.subr.mxu0 0.0
  %92 = vmatpush1.msra.mxu0 0.0
  %93 = vmatprep.subr.mxu0 0.0
  %94 = vmatpush1.msra.mxu0 0.0
  %95 = vmatprep.subr.mxu0 0.0
  %96 = vmatpush1.msra.mxu0 0.0
  %97 = vmatprep.subr.mxu0 0.0
  %98 = vmatpush1.msra.mxu0 0.0
  %99 = vmatprep.subr.mxu0 0.0
  %100 = vmatpush1.msra.mxu0 0.0
  %101 = vmatprep.subr.mxu0 0.0
  %102 = vmatpush1.msra.mxu0 0.0
  %103 = vmatprep.subr.mxu0 0.0
  %104 = vmatpush1.msra.mxu0 0.0
  %105 = vmatprep.subr.mxu0 0.0
  %106 = vmatpush1.msra.mxu0 0.0
  %107 = vmatprep.mubr.f32.mxu0 0.0
  %108 = vmatmul.mubr.f32.gmra.mrb[0].mxu0 %v28
  %v109 = vpop.f32.mrb[0].mxu0
  %v110 = vadd.f32 %v24, %v109
  %v111 = vpop.f32.mrb[0].mxu0
  %112 = vmatprep.mubr.f32.mxu0 0.0
  %113 = vmatmul.mubr.f32.gmra.mrb[0].mxu0 %v31
  %v114 = vpop.f32.mrb[0].mxu0
  %v115 = vadd.f32 %v24, %v114
  %v116 = vpop.f32.mrb[0].mxu0
  %117 = vmatprep.mubr.f32.mxu0 0.0
  %118 = vmatmul.mubr.f32.gmra.mrb[0].mxu0 %v34
  %v119 = vpop.f32.mrb[0].mxu0
  %v120 = vadd.f32 %v24, %v119
  %v121 = vpop.f32.mrb[0].mxu0
  %122 = vmatprep.mubr.f32.mxu0 0.0
  %123 = vmatmul.mubr.f32.gmra.mrb[0].mxu0 %v37
  %v124 = vpop.f32.mrb[0].mxu0
  %v125 = vadd.f32 %v24, %v124
  %v126 = vpop.f32.mrb[0].mxu0
  %127 = vdwg.mxu0
  %v128 = vmax.f32 %v110, 0.0
  %v129 = vmax.f32 %v115, 0.0
  %v130 = vmax.f32 %v120, 0.0
  %v131 = vmax.f32 %v125, 0.0
  %vm132 = vcmask 130048
  %133 = vst.msk [vmem:[%s3] sm:$0xff] %vm132, %v128
  %134 = vst.msk [vmem:[%s3 + $0x8] sm:$0xff] %vm132, %v129
  %135 = vst.msk [vmem:[%s3 + $0x10] sm:$0xff] %vm132, %v130
  %136 = vst.msk [vmem:[%s3 + $0x18] sm:$0xff] %vm132, %v131
  // Predicated region
  $region14: #{tpu_custom_call.1} parent=0 // pred_check
    _
  $region15: #{tpu_custom_call.1} parent=0 // pred_check_branch
    %138 = sbr.rel (0) target = $region17
  $region16: #{tpu_custom_call.1} parent=0 // pred_region
    _
  $region17: #{tpu_custom_call.1} parent=0 // pred_fallthru
    _
  // Predicated region
  $region18: #{tpu_custom_call.1} parent=0 // pred_check
    _
  $region19: #{tpu_custom_call.1} parent=0 // pred_check_branch
    %140 = sbr.rel (0) target = $region21
  $region20: #{tpu_custom_call.1} parent=0 // pred_region
    _
  $region21: #{tpu_custom_call.1} parent=0 // pred_fallthru
    _

</llo_original>
